<compile_context>
chip_gen: v7x
topology: tpu7x:2x2x1
jax: 0.10.0
libtpu: 0.0.40
codegen_flags: <defaults>
</compile_context>

<pallas_src>
import jax
import jax.numpy as jnp
from jax import lax
from jax.experimental import pallas as pl
from jax.experimental.pallas import tpu as pltpu

HIDDEN = 32


def _lstm_head_kernel(x_ref,      # (S*Bp, F)  time-major rows: row = t*Bp + b
                      wih_ref,    # (F, 4H)    input  -> gates (pre-transposed)
                      whh_ref,    # (H, 4H)    hidden -> gates (pre-transposed)
                      b_ref,      # (1, 4H)    combined bias (b_ih + b_hh)
                      wh_ref,     # (1, H)     folded head weight row (w_graph @ w_fc)^T
                      bh_ref,     # (1, 1)     folded head bias (b_graph @ w_fc + b_fc)
                      out_ref):   # (Bp, 1)
    H = HIDDEN
    Bp = out_ref.shape[0]
    S = x_ref.shape[0] // Bp

    # Per-lane pre-scale: 0.5 on i/f/o lanes (sigmoid via tanh), 1.0 on g lanes.
    # Folded into W_hh and the hoisted projection so it is NOT on the serial chain.
    lane = lax.broadcasted_iota(jnp.int32, (1, 4 * H), 1)
    pre = jnp.where((lane >= 2 * H) & (lane < 3 * H), 1.0, 0.5).astype(jnp.float32)

    # bf16 operands -> single-pass MXU on all generations; f32 accumulation.
    whh = (whh_ref[...] * pre).astype(jnp.bfloat16)                      # (H, 4H)

    # Hoisted input projection for every timestep: one MXU call, bias and the
    # sigmoid-via-tanh pre-scale folded in once.
    gx = (jnp.dot(x_ref[...].astype(jnp.bfloat16),
                  wih_ref[...].astype(jnp.bfloat16),
                  preferred_element_type=jnp.float32)
          + b_ref[...]) * pre                                            # (S*Bp, 4H)

    h = None
    c = None
    # Fully-unrolled recurrence (S static). Per step the serial chain is:
    # bf16 cast -> h @ W_hh (single MXU pass) -> add gx slab -> one tanh ->
    # cheap VPU gate math.
    for t in range(S):
        gxt = gx[t * Bp:(t + 1) * Bp, :]                 # contiguous full-vreg slice
        if h is None:                                    # t == 0: h0 == 0
            gates = gxt
        else:
            gates = jnp.dot(h.astype(jnp.bfloat16), whh,
                            preferred_element_type=jnp.float32) + gxt
        tt = jnp.tanh(gates)                             # single EUP push per step
        half = 0.5 * tt
        i = half[:, 0 * H:1 * H] + 0.5                   # sigmoid(i) = 0.5*tanh(0.5 i)+0.5
        f = half[:, 1 * H:2 * H] + 0.5
        g = tt[:, 2 * H:3 * H]                           # plain tanh (pre-scale was 1.0)
        o = half[:, 3 * H:4 * H] + 0.5
        c = i * g if c is None else f * c + i * g        # c0 == 0
        h = o * jnp.tanh(c)

    # Folded head (graph_fc -> fc): VPU multiply + XLU lane reduce; no MXU
    # push/pop for a single output lane.
    out = jnp.sum(h * wh_ref[...], axis=-1, keepdims=True) + bh_ref[...]
    out_ref[...] = out.astype(out_ref.dtype)


def graph_augmented_forward(x, params):
    """x: (batch, seq, features) float32. Returns (batch, 1) float32."""
    B, S, F = x.shape
    Bp = max(8, ((B + 7) // 8) * 8)          # pad batch to 8 sublanes (f32)

    xt = jnp.transpose(x, (1, 0, 2))         # time-major (S, B, F) — tiny one-time copy
    if Bp != B:
        xt = jnp.pad(xt, ((0, 0), (0, Bp - B), (0, 0)))
    x2 = xt.reshape(S * Bp, F)               # row = t*Bp + b -> contiguous per-step slab

    vmem = pl.BlockSpec(memory_space=pltpu.MemorySpace.VMEM)
    out = pl.pallas_call(
        _lstm_head_kernel,
        out_shape=jax.ShapeDtypeStruct((Bp, 1), jnp.float32),
        in_specs=[vmem] * 6,
        out_specs=vmem,
    )(x2,
      params["w_ih"], params["w_hh"], params["b"],
      params["w_head_row"], params["b_head"])
    return out[:B]


def init_params(key, input_dim, hidden=HIDDEN):
    """Deterministic synthetic init (PyTorch-style uniform(-1/sqrt(H), 1/sqrt(H)))."""
    ks = jax.random.split(key, 8)
    bound = 1.0 / jnp.sqrt(hidden)
    u = lambda k, shape: jax.random.uniform(k, shape, jnp.float32, -bound, bound)
    # stored pre-transposed: y = x @ W
    w_ih = u(ks[0], (input_dim, 4 * hidden))
    w_hh = u(ks[1], (hidden, 4 * hidden))
    b_ih = u(ks[2], (1, 4 * hidden))
    b_hh = u(ks[3], (1, 4 * hidden))
    w_graph = u(ks[4], (hidden, hidden))
    b_graph = u(ks[5], (1, hidden))
    w_fc = u(ks[6], (hidden, 1))
    b_fc = u(ks[7], (1, 1))
    # Folded head (exact: the PyTorch module has no nonlinearity between
    # graph_fc and fc, and adj is unused).
    w_head = w_graph @ w_fc                        # (H, 1)
    b_head = b_graph @ w_fc + b_fc                 # (1, 1)
    return {
        "w_ih": w_ih, "w_hh": w_hh, "b": b_ih + b_hh,
        "w_graph": w_graph, "b_graph": b_graph,
        "w_fc": w_fc, "b_fc": b_fc,
        "w_head_row": w_head.T,                    # (1, H) row for VPU-reduce head
        "b_head": b_head,
    }


def reference_forward(x, p):
    """Pure-JAX f32 reference mirroring torch.nn.LSTM + Linear(32,32) + Linear(32,1)."""
    B, S, F = x.shape
    H = HIDDEN
    h = jnp.zeros((B, H), jnp.float32)
    c = jnp.zeros((B, H), jnp.float32)
    for t in range(S):
        gates = x[:, t, :] @ p["w_ih"] + h @ p["w_hh"] + p["b"]
        i = jax.nn.sigmoid(gates[:, 0 * H:1 * H])
        f = jax.nn.sigmoid(gates[:, 1 * H:2 * H])
        g = jnp.tanh(gates[:, 2 * H:3 * H])
        o = jax.nn.sigmoid(gates[:, 3 * H:4 * H])
        c = f * c + i * g
        h = o * jnp.tanh(c)
    graph = h @ p["w_graph"] + p["b_graph"]
    return graph @ p["w_fc"] + p["b_fc"]


if __name__ == "__main__":
    batch, seq, features = 2, 8, 16

    key = jax.random.PRNGKey(0)
    kx, kp = jax.random.split(key)
    x = jax.random.normal(kx, (batch, seq, features), jnp.float32)
    params = init_params(kp, features)

    out = graph_augmented_forward(x, params)
    out = jax.block_until_ready(out)

    ref = reference_forward(x, params)
    assert out.shape == (batch, 1)
    # Tolerance reflects bf16 MXU inputs (f32 accumulation) over an 8-step LSTM.
    assert jnp.allclose(out, ref, atol=2e-2, rtol=2e-2), (out, ref)

    print("KERNEL_OK")
</pallas_src>

<mosaic_0001>
module attributes {stable_mosaic.version = 11 : i64} {
  func.func @_lstm_head_kernel(%arg0: memref<64x16xf32, #tpu.memory_space<vmem>>, %arg1: memref<16x128xf32, #tpu.memory_space<vmem>>, %arg2: memref<32x128xf32, #tpu.memory_space<vmem>>, %arg3: memref<1x128xf32, #tpu.memory_space<vmem>>, %arg4: memref<1x32xf32, #tpu.memory_space<vmem>>, %arg5: memref<1x1xf32, #tpu.memory_space<vmem>>, %arg6: memref<8x1xf32, #tpu.memory_space<vmem>>) attributes {dimension_semantics = [], scalar_prefetch = 0 : i64, scratch_operands = 0 : i64, tpu.core_type = #tpu.core_type<tc>} {
    %0 = tpu.iota {dimensions = array<i32: 1>} : vector<1x128xi32>
    %c64_i32 = arith.constant 64 : i32
    %1 = vector.broadcast %c64_i32 : i32 to vector<1x128xi32>
    %2 = arith.cmpi sge, %0, %1 : vector<1x128xi32>
    %c96_i32 = arith.constant 96 : i32
    %3 = vector.broadcast %c96_i32 : i32 to vector<1x128xi32>
    %4 = arith.cmpi slt, %0, %3 : vector<1x128xi32>
    %5 = arith.andi %2, %4 : vector<1x128xi1>
    %cst = arith.constant 1.000000e+00 : f32
    %cst_0 = arith.constant 5.000000e-01 : f32
    %6 = vector.broadcast %cst : f32 to vector<1x128xf32>
    %7 = vector.broadcast %cst_0 : f32 to vector<1x128xf32>
    %8 = arith.select %5, %6, %7 : vector<1x128xi1>, vector<1x128xf32>
    %c0 = arith.constant 0 : index
    %c0_1 = arith.constant 0 : index
    %9 = vector.load %arg2[%c0, %c0_1] : memref<32x128xf32, #tpu.memory_space<vmem>>, vector<32x128xf32>
    %10 = vector.broadcast %8 : vector<1x128xf32> to vector<32x128xf32>
    %11 = arith.mulf %9, %10 : vector<32x128xf32>
    %12 = arith.truncf %11 : vector<32x128xf32> to vector<32x128xbf16>
    %c0_2 = arith.constant 0 : index
    %c0_3 = arith.constant 0 : index
    %13 = vector.load %arg0[%c0_2, %c0_3] : memref<64x16xf32, #tpu.memory_space<vmem>>, vector<64x16xf32>
    %14 = arith.truncf %13 : vector<64x16xf32> to vector<64x16xbf16>
    %c0_4 = arith.constant 0 : index
    %c0_5 = arith.constant 0 : index
    %15 = vector.load %arg1[%c0_4, %c0_5] : memref<16x128xf32, #tpu.memory_space<vmem>>, vector<16x128xf32>
    %16 = arith.truncf %15 : vector<16x128xf32> to vector<16x128xbf16>
    %cst_6 = arith.constant dense<0.000000e+00> : vector<64x128xf32>
    %17 = tpu.matmul %14, %16, %cst_6 {dimension_numbers = #tpu.dot_dimension_numbers<[1], [0], [0], [1], [0, 0, 1, 1], [], []>} : vector<64x16xbf16>, vector<16x128xbf16>, vector<64x128xf32> -> vector<64x128xf32>
    %c0_7 = arith.constant 0 : index
    %c0_8 = arith.constant 0 : index
    %18 = vector.load %arg3[%c0_7, %c0_8] : memref<1x128xf32, #tpu.memory_space<vmem>>, vector<1x128xf32>
    %19 = vector.broadcast %18 : vector<1x128xf32> to vector<64x128xf32>
    %20 = arith.addf %17, %19 : vector<64x128xf32>
    %21 = vector.broadcast %8 : vector<1x128xf32> to vector<64x128xf32>
    %22 = arith.mulf %20, %21 : vector<64x128xf32>
    %23 = vector.extract_strided_slice %22 {offsets = [0, 0], sizes = [8, 128], strides = [1, 1]} : vector<64x128xf32> to vector<8x128xf32>
    %24 = math.tanh %23 : vector<8x128xf32>
    %cst_9 = arith.constant 5.000000e-01 : f32
    %25 = vector.broadcast %cst_9 : f32 to vector<8x128xf32>
    %26 = arith.mulf %25, %24 : vector<8x128xf32>
    %27 = vector.extract_strided_slice %26 {offsets = [0, 0], sizes = [8, 32], strides = [1, 1]} : vector<8x128xf32> to vector<8x32xf32>
    %cst_10 = arith.constant 5.000000e-01 : f32
    %28 = vector.broadcast %cst_10 : f32 to vector<8x32xf32>
    %29 = arith.addf %27, %28 : vector<8x32xf32>
    %30 = vector.extract_strided_slice %24 {offsets = [0, 64], sizes = [8, 32], strides = [1, 1]} : vector<8x128xf32> to vector<8x32xf32>
    %31 = vector.extract_strided_slice %26 {offsets = [0, 96], sizes = [8, 32], strides = [1, 1]} : vector<8x128xf32> to vector<8x32xf32>
    %cst_11 = arith.constant 5.000000e-01 : f32
    %32 = vector.broadcast %cst_11 : f32 to vector<8x32xf32>
    %33 = arith.addf %31, %32 : vector<8x32xf32>
    %34 = arith.mulf %29, %30 : vector<8x32xf32>
    %35 = math.tanh %34 : vector<8x32xf32>
    %36 = arith.mulf %33, %35 : vector<8x32xf32>
    %37 = vector.extract_strided_slice %22 {offsets = [8, 0], sizes = [8, 128], strides = [1, 1]} : vector<64x128xf32> to vector<8x128xf32>
    %38 = arith.truncf %36 : vector<8x32xf32> to vector<8x32xbf16>
    %cst_12 = arith.constant dense<0.000000e+00> : vector<8x128xf32>
    %39 = tpu.matmul %38, %12, %cst_12 {dimension_numbers = #tpu.dot_dimension_numbers<[1], [0], [0], [1], [0, 0, 1, 1], [], []>} : vector<8x32xbf16>, vector<32x128xbf16>, vector<8x128xf32> -> vector<8x128xf32>
    %40 = arith.addf %39, %37 : vector<8x128xf32>
    %41 = math.tanh %40 : vector<8x128xf32>
    %cst_13 = arith.constant 5.000000e-01 : f32
    %42 = vector.broadcast %cst_13 : f32 to vector<8x128xf32>
    %43 = arith.mulf %42, %41 : vector<8x128xf32>
    %44 = vector.extract_strided_slice %43 {offsets = [0, 0], sizes = [8, 32], strides = [1, 1]} : vector<8x128xf32> to vector<8x32xf32>
    %cst_14 = arith.constant 5.000000e-01 : f32
    %45 = vector.broadcast %cst_14 : f32 to vector<8x32xf32>
    %46 = arith.addf %44, %45 : vector<8x32xf32>
    %47 = vector.extract_strided_slice %43 {offsets = [0, 32], sizes = [8, 32], strides = [1, 1]} : vector<8x128xf32> to vector<8x32xf32>
    %cst_15 = arith.constant 5.000000e-01 : f32
    %48 = vector.broadcast %cst_15 : f32 to vector<8x32xf32>
    %49 = arith.addf %47, %48 : vector<8x32xf32>
    %50 = vector.extract_strided_slice %41 {offsets = [0, 64], sizes = [8, 32], strides = [1, 1]} : vector<8x128xf32> to vector<8x32xf32>
    %51 = vector.extract_strided_slice %43 {offsets = [0, 96], sizes = [8, 32], strides = [1, 1]} : vector<8x128xf32> to vector<8x32xf32>
    %cst_16 = arith.constant 5.000000e-01 : f32
    %52 = vector.broadcast %cst_16 : f32 to vector<8x32xf32>
    %53 = arith.addf %51, %52 : vector<8x32xf32>
    %54 = arith.mulf %49, %34 : vector<8x32xf32>
    %55 = arith.mulf %46, %50 : vector<8x32xf32>
    %56 = arith.addf %54, %55 : vector<8x32xf32>
    %57 = math.tanh %56 : vector<8x32xf32>
    %58 = arith.mulf %53, %57 : vector<8x32xf32>
    %59 = vector.extract_strided_slice %22 {offsets = [16, 0], sizes = [8, 128], strides = [1, 1]} : vector<64x128xf32> to vector<8x128xf32>
    %60 = arith.truncf %58 : vector<8x32xf32> to vector<8x32xbf16>
    %cst_17 = arith.constant dense<0.000000e+00> : vector<8x128xf32>
    %61 = tpu.matmul %60, %12, %cst_17 {dimension_numbers = #tpu.dot_dimension_numbers<[1], [0], [0], [1], [0, 0, 1, 1], [], []>} : vector<8x32xbf16>, vector<32x128xbf16>, vector<8x128xf32> -> vector<8x128xf32>
    %62 = arith.addf %61, %59 : vector<8x128xf32>
    %63 = math.tanh %62 : vector<8x128xf32>
    %cst_18 = arith.constant 5.000000e-01 : f32
    %64 = vector.broadcast %cst_18 : f32 to vector<8x128xf32>
    %65 = arith.mulf %64, %63 : vector<8x128xf32>
    %66 = vector.extract_strided_slice %65 {offsets = [0, 0], sizes = [8, 32], strides = [1, 1]} : vector<8x128xf32> to vector<8x32xf32>
    %cst_19 = arith.constant 5.000000e-01 : f32
    %67 = vector.broadcast %cst_19 : f32 to vector<8x32xf32>
    %68 = arith.addf %66, %67 : vector<8x32xf32>
    %69 = vector.extract_strided_slice %65 {offsets = [0, 32], sizes = [8, 32], strides = [1, 1]} : vector<8x128xf32> to vector<8x32xf32>
    %cst_20 = arith.constant 5.000000e-01 : f32
    %70 = vector.broadcast %cst_20 : f32 to vector<8x32xf32>
    %71 = arith.addf %69, %70 : vector<8x32xf32>
    %72 = vector.extract_strided_slice %63 {offsets = [0, 64], sizes = [8, 32], strides = [1, 1]} : vector<8x128xf32> to vector<8x32xf32>
    %73 = vector.extract_strided_slice %65 {offsets = [0, 96], sizes = [8, 32], strides = [1, 1]} : vector<8x128xf32> to vector<8x32xf32>
    %cst_21 = arith.constant 5.000000e-01 : f32
    %74 = vector.broadcast %cst_21 : f32 to vector<8x32xf32>
    %75 = arith.addf %73, %74 : vector<8x32xf32>
    %76 = arith.mulf %71, %56 : vector<8x32xf32>
    %77 = arith.mulf %68, %72 : vector<8x32xf32>
    %78 = arith.addf %76, %77 : vector<8x32xf32>
    %79 = math.tanh %78 : vector<8x32xf32>
    %80 = arith.mulf %75, %79 : vector<8x32xf32>
    %81 = vector.extract_strided_slice %22 {offsets = [24, 0], sizes = [8, 128], strides = [1, 1]} : vector<64x128xf32> to vector<8x128xf32>
    %82 = arith.truncf %80 : vector<8x32xf32> to vector<8x32xbf16>
    %cst_22 = arith.constant dense<0.000000e+00> : vector<8x128xf32>
    %83 = tpu.matmul %82, %12, %cst_22 {dimension_numbers = #tpu.dot_dimension_numbers<[1], [0], [0], [1], [0, 0, 1, 1], [], []>} : vector<8x32xbf16>, vector<32x128xbf16>, vector<8x128xf32> -> vector<8x128xf32>
    %84 = arith.addf %83, %81 : vector<8x128xf32>
    %85 = math.tanh %84 : vector<8x128xf32>
    %cst_23 = arith.constant 5.000000e-01 : f32
    %86 = vector.broadcast %cst_23 : f32 to vector<8x128xf32>
    %87 = arith.mulf %86, %85 : vector<8x128xf32>
    %88 = vector.extract_strided_slice %87 {offsets = [0, 0], sizes = [8, 32], strides = [1, 1]} : vector<8x128xf32> to vector<8x32xf32>
    %cst_24 = arith.constant 5.000000e-01 : f32
    %89 = vector.broadcast %cst_24 : f32 to vector<8x32xf32>
    %90 = arith.addf %88, %89 : vector<8x32xf32>
    %91 = vector.extract_strided_slice %87 {offsets = [0, 32], sizes = [8, 32], strides = [1, 1]} : vector<8x128xf32> to vector<8x32xf32>
    %cst_25 = arith.constant 5.000000e-01 : f32
    %92 = vector.broadcast %cst_25 : f32 to vector<8x32xf32>
    %93 = arith.addf %91, %92 : vector<8x32xf32>
    %94 = vector.extract_strided_slice %85 {offsets = [0, 64], sizes = [8, 32], strides = [1, 1]} : vector<8x128xf32> to vector<8x32xf32>
    %95 = vector.extract_strided_slice %87 {offsets = [0, 96], sizes = [8, 32], strides = [1, 1]} : vector<8x128xf32> to vector<8x32xf32>
    %cst_26 = arith.constant 5.000000e-01 : f32
    %96 = vector.broadcast %cst_26 : f32 to vector<8x32xf32>
    %97 = arith.addf %95, %96 : vector<8x32xf32>
    %98 = arith.mulf %93, %78 : vector<8x32xf32>
    %99 = arith.mulf %90, %94 : vector<8x32xf32>
    %100 = arith.addf %98, %99 : vector<8x32xf32>
    %101 = math.tanh %100 : vector<8x32xf32>
    %102 = arith.mulf %97, %101 : vector<8x32xf32>
    %103 = vector.extract_strided_slice %22 {offsets = [32, 0], sizes = [8, 128], strides = [1, 1]} : vector<64x128xf32> to vector<8x128xf32>
    %104 = arith.truncf %102 : vector<8x32xf32> to vector<8x32xbf16>
    %cst_27 = arith.constant dense<0.000000e+00> : vector<8x128xf32>
    %105 = tpu.matmul %104, %12, %cst_27 {dimension_numbers = #tpu.dot_dimension_numbers<[1], [0], [0], [1], [0, 0, 1, 1], [], []>} : vector<8x32xbf16>, vector<32x128xbf16>, vector<8x128xf32> -> vector<8x128xf32>
    %106 = arith.addf %105, %103 : vector<8x128xf32>
    %107 = math.tanh %106 : vector<8x128xf32>
    %cst_28 = arith.constant 5.000000e-01 : f32
    %108 = vector.broadcast %cst_28 : f32 to vector<8x128xf32>
    %109 = arith.mulf %108, %107 : vector<8x128xf32>
    %110 = vector.extract_strided_slice %109 {offsets = [0, 0], sizes = [8, 32], strides = [1, 1]} : vector<8x128xf32> to vector<8x32xf32>
    %cst_29 = arith.constant 5.000000e-01 : f32
    %111 = vector.broadcast %cst_29 : f32 to vector<8x32xf32>
    %112 = arith.addf %110, %111 : vector<8x32xf32>
    %113 = vector.extract_strided_slice %109 {offsets = [0, 32], sizes = [8, 32], strides = [1, 1]} : vector<8x128xf32> to vector<8x32xf32>
    %cst_30 = arith.constant 5.000000e-01 : f32
    %114 = vector.broadcast %cst_30 : f32 to vector<8x32xf32>
    %115 = arith.addf %113, %114 : vector<8x32xf32>
    %116 = vector.extract_strided_slice %107 {offsets = [0, 64], sizes = [8, 32], strides = [1, 1]} : vector<8x128xf32> to vector<8x32xf32>
    %117 = vector.extract_strided_slice %109 {offsets = [0, 96], sizes = [8, 32], strides = [1, 1]} : vector<8x128xf32> to vector<8x32xf32>
    %cst_31 = arith.constant 5.000000e-01 : f32
    %118 = vector.broadcast %cst_31 : f32 to vector<8x32xf32>
    %119 = arith.addf %117, %118 : vector<8x32xf32>
    %120 = arith.mulf %115, %100 : vector<8x32xf32>
    %121 = arith.mulf %112, %116 : vector<8x32xf32>
    %122 = arith.addf %120, %121 : vector<8x32xf32>
    %123 = math.tanh %122 : vector<8x32xf32>
    %124 = arith.mulf %119, %123 : vector<8x32xf32>
    %125 = vector.extract_strided_slice %22 {offsets = [40, 0], sizes = [8, 128], strides = [1, 1]} : vector<64x128xf32> to vector<8x128xf32>
    %126 = arith.truncf %124 : vector<8x32xf32> to vector<8x32xbf16>
    %cst_32 = arith.constant dense<0.000000e+00> : vector<8x128xf32>
    %127 = tpu.matmul %126, %12, %cst_32 {dimension_numbers = #tpu.dot_dimension_numbers<[1], [0], [0], [1], [0, 0, 1, 1], [], []>} : vector<8x32xbf16>, vector<32x128xbf16>, vector<8x128xf32> -> vector<8x128xf32>
    %128 = arith.addf %127, %125 : vector<8x128xf32>
    %129 = math.tanh %128 : vector<8x128xf32>
    %cst_33 = arith.constant 5.000000e-01 : f32
    %130 = vector.broadcast %cst_33 : f32 to vector<8x128xf32>
    %131 = arith.mulf %130, %129 : vector<8x128xf32>
    %132 = vector.extract_strided_slice %131 {offsets = [0, 0], sizes = [8, 32], strides = [1, 1]} : vector<8x128xf32> to vector<8x32xf32>
    %cst_34 = arith.constant 5.000000e-01 : f32
    %133 = vector.broadcast %cst_34 : f32 to vector<8x32xf32>
    %134 = arith.addf %132, %133 : vector<8x32xf32>
    %135 = vector.extract_strided_slice %131 {offsets = [0, 32], sizes = [8, 32], strides = [1, 1]} : vector<8x128xf32> to vector<8x32xf32>
    %cst_35 = arith.constant 5.000000e-01 : f32
    %136 = vector.broadcast %cst_35 : f32 to vector<8x32xf32>
    %137 = arith.addf %135, %136 : vector<8x32xf32>
    %138 = vector.extract_strided_slice %129 {offsets = [0, 64], sizes = [8, 32], strides = [1, 1]} : vector<8x128xf32> to vector<8x32xf32>
    %139 = vector.extract_strided_slice %131 {offsets = [0, 96], sizes = [8, 32], strides = [1, 1]} : vector<8x128xf32> to vector<8x32xf32>
    %cst_36 = arith.constant 5.000000e-01 : f32
    %140 = vector.broadcast %cst_36 : f32 to vector<8x32xf32>
    %141 = arith.addf %139, %140 : vector<8x32xf32>
    %142 = arith.mulf %137, %122 : vector<8x32xf32>
    %143 = arith.mulf %134, %138 : vector<8x32xf32>
    %144 = arith.addf %142, %143 : vector<8x32xf32>
    %145 = math.tanh %144 : vector<8x32xf32>
    %146 = arith.mulf %141, %145 : vector<8x32xf32>
    %147 = vector.extract_strided_slice %22 {offsets = [48, 0], sizes = [8, 128], strides = [1, 1]} : vector<64x128xf32> to vector<8x128xf32>
    %148 = arith.truncf %146 : vector<8x32xf32> to vector<8x32xbf16>
    %cst_37 = arith.constant dense<0.000000e+00> : vector<8x128xf32>
    %149 = tpu.matmul %148, %12, %cst_37 {dimension_numbers = #tpu.dot_dimension_numbers<[1], [0], [0], [1], [0, 0, 1, 1], [], []>} : vector<8x32xbf16>, vector<32x128xbf16>, vector<8x128xf32> -> vector<8x128xf32>
    %150 = arith.addf %149, %147 : vector<8x128xf32>
    %151 = math.tanh %150 : vector<8x128xf32>
    %cst_38 = arith.constant 5.000000e-01 : f32
    %152 = vector.broadcast %cst_38 : f32 to vector<8x128xf32>
    %153 = arith.mulf %152, %151 : vector<8x128xf32>
    %154 = vector.extract_strided_slice %153 {offsets = [0, 0], sizes = [8, 32], strides = [1, 1]} : vector<8x128xf32> to vector<8x32xf32>
    %cst_39 = arith.constant 5.000000e-01 : f32
    %155 = vector.broadcast %cst_39 : f32 to vector<8x32xf32>
    %156 = arith.addf %154, %155 : vector<8x32xf32>
    %157 = vector.extract_strided_slice %153 {offsets = [0, 32], sizes = [8, 32], strides = [1, 1]} : vector<8x128xf32> to vector<8x32xf32>
    %cst_40 = arith.constant 5.000000e-01 : f32
    %158 = vector.broadcast %cst_40 : f32 to vector<8x32xf32>
    %159 = arith.addf %157, %158 : vector<8x32xf32>
    %160 = vector.extract_strided_slice %151 {offsets = [0, 64], sizes = [8, 32], strides = [1, 1]} : vector<8x128xf32> to vector<8x32xf32>
    %161 = vector.extract_strided_slice %153 {offsets = [0, 96], sizes = [8, 32], strides = [1, 1]} : vector<8x128xf32> to vector<8x32xf32>
    %cst_41 = arith.constant 5.000000e-01 : f32
    %162 = vector.broadcast %cst_41 : f32 to vector<8x32xf32>
    %163 = arith.addf %161, %162 : vector<8x32xf32>
    %164 = arith.mulf %159, %144 : vector<8x32xf32>
    %165 = arith.mulf %156, %160 : vector<8x32xf32>
    %166 = arith.addf %164, %165 : vector<8x32xf32>
    %167 = math.tanh %166 : vector<8x32xf32>
    %168 = arith.mulf %163, %167 : vector<8x32xf32>
    %169 = vector.extract_strided_slice %22 {offsets = [56, 0], sizes = [8, 128], strides = [1, 1]} : vector<64x128xf32> to vector<8x128xf32>
    %170 = arith.truncf %168 : vector<8x32xf32> to vector<8x32xbf16>
    %cst_42 = arith.constant dense<0.000000e+00> : vector<8x128xf32>
    %171 = tpu.matmul %170, %12, %cst_42 {dimension_numbers = #tpu.dot_dimension_numbers<[1], [0], [0], [1], [0, 0, 1, 1], [], []>} : vector<8x32xbf16>, vector<32x128xbf16>, vector<8x128xf32> -> vector<8x128xf32>
    %172 = arith.addf %171, %169 : vector<8x128xf32>
    %173 = math.tanh %172 : vector<8x128xf32>
    %cst_43 = arith.constant 5.000000e-01 : f32
    %174 = vector.broadcast %cst_43 : f32 to vector<8x128xf32>
    %175 = arith.mulf %174, %173 : vector<8x128xf32>
    %176 = vector.extract_strided_slice %175 {offsets = [0, 0], sizes = [8, 32], strides = [1, 1]} : vector<8x128xf32> to vector<8x32xf32>
    %cst_44 = arith.constant 5.000000e-01 : f32
    %177 = vector.broadcast %cst_44 : f32 to vector<8x32xf32>
    %178 = arith.addf %176, %177 : vector<8x32xf32>
    %179 = vector.extract_strided_slice %175 {offsets = [0, 32], sizes = [8, 32], strides = [1, 1]} : vector<8x128xf32> to vector<8x32xf32>
    %cst_45 = arith.constant 5.000000e-01 : f32
    %180 = vector.broadcast %cst_45 : f32 to vector<8x32xf32>
    %181 = arith.addf %179, %180 : vector<8x32xf32>
    %182 = vector.extract_strided_slice %173 {offsets = [0, 64], sizes = [8, 32], strides = [1, 1]} : vector<8x128xf32> to vector<8x32xf32>
    %183 = vector.extract_strided_slice %175 {offsets = [0, 96], sizes = [8, 32], strides = [1, 1]} : vector<8x128xf32> to vector<8x32xf32>
    %cst_46 = arith.constant 5.000000e-01 : f32
    %184 = vector.broadcast %cst_46 : f32 to vector<8x32xf32>
    %185 = arith.addf %183, %184 : vector<8x32xf32>
    %186 = arith.mulf %181, %166 : vector<8x32xf32>
    %187 = arith.mulf %178, %182 : vector<8x32xf32>
    %188 = arith.addf %186, %187 : vector<8x32xf32>
    %189 = math.tanh %188 : vector<8x32xf32>
    %190 = arith.mulf %185, %189 : vector<8x32xf32>
    %c0_47 = arith.constant 0 : index
    %c0_48 = arith.constant 0 : index
    %191 = vector.load %arg4[%c0_47, %c0_48] : memref<1x32xf32, #tpu.memory_space<vmem>>, vector<1x32xf32>
    %192 = vector.broadcast %191 : vector<1x32xf32> to vector<8x32xf32>
    %193 = arith.mulf %190, %192 : vector<8x32xf32>
    %cst_49 = arith.constant dense<0.000000e+00> : vector<8xf32>
    %194 = vector.multi_reduction <add>, %193, %cst_49 [1] : vector<8x32xf32> to vector<8xf32>
    %195 = vector.shape_cast %194 : vector<8xf32> to vector<8x1xf32>
    %c0_50 = arith.constant 0 : index
    %c0_51 = arith.constant 0 : index
    %196 = vector.load %arg5[%c0_50, %c0_51] : memref<1x1xf32, #tpu.memory_space<vmem>>, vector<1x1xf32>
    %197 = vector.broadcast %196 : vector<1x1xf32> to vector<8x1xf32>
    %198 = arith.addf %195, %197 : vector<8x1xf32>
    %c0_52 = arith.constant 0 : index
    %c0_53 = arith.constant 0 : index
    %199 = vector.load %arg6[%c0_52, %c0_53] : memref<8x1xf32, #tpu.memory_space<vmem>>, vector<8x1xf32>
    tpu.vector_store %arg6[%c0_52, %c0_53], %198 {strides = array<i32>} : memref<8x1xf32, #tpu.memory_space<vmem>>, vector<8x1xf32>,
    return
  }
}

</mosaic_0001>

<llo_original>
// kernel: tpu_custom_call.1
$region0: #{tpu_custom_call.1}
  #allocation0 [shape = 'u32[]', space=smem, size = 0x4, offset = 0x4, fixed_abs, tag = 'smem constant byte address 0x4 - core index']
  #allocation1 [shape = 'u32[144,128]{1,0:T(1,128)}', space=vmem, size = 0x12000, scoped, tag = 'internal scratch']
  #allocation2 [shape = 'f32[1,1]{1,0:T(1,128)S(1)}', space=vmem, size = 0x200, scoped, tag = 'scoped memory for tpu_custom_call.1']
  %s0 = inlined_call_operand.vmem [shape: f32[64,16], index: 0, kind: input, shape index: {}]
  %s1 = inlined_call_operand.vmem [shape: f32[16,128], index: 1, kind: input, shape index: {}]
  %s2 = inlined_call_operand.vmem [shape: f32[32,128], index: 2, kind: input, shape index: {}]
  %s3 = inlined_call_operand.vmem [shape: f32[1,128], index: 3, kind: input, shape index: {}]
  %s4 = inlined_call_operand.vmem [shape: f32[1,32], index: 4, kind: input, shape index: {}]
  %s5 = inlined_call_operand.<no memory space> [shape: f32[1,1], index: 5, kind: input, shape index: {}]
  %s6 = inlined_call_operand.vmem [shape: f32[8,1], index: 6, kind: output, shape index: {}]
  %s7 = sld [smem:[#allocation0]]
  $region34: #{tpu_custom_call.1} parent=0
    _
  %s9 = ssub.s32 1, %s7
  %s10 = scalar_select 0, %s9, %s7
  %v11 = vstv %s5
  %12 = vst [vmem:[#allocation2] sm:$0x1] %v11
  // Predicated region
  $region2: #{tpu_custom_call.1} parent=0 // pred_check
    _
  $region3: #{tpu_custom_call.1} parent=0 // pred_check_branch
    %14 = sbr.rel (0) target = $region5
  $region4: #{tpu_custom_call.1} parent=0 // pred_region
    _
  $region5: #{tpu_custom_call.1} parent=0 // pred_fallthru
    _
  // Predicated region
  $region6: #{tpu_custom_call.1} parent=0 // pred_check
    _
  $region7: #{tpu_custom_call.1} parent=0 // pred_check_branch
    %16 = sbr.rel (0) target = $region9
  $region8: #{tpu_custom_call.1} parent=0 // pred_region
    _
  $region9: #{tpu_custom_call.1} parent=0 // pred_fallthru
    _
  // Predicated region
  $region10: #{tpu_custom_call.1} parent=0 // pred_check
    _
  $region11: #{tpu_custom_call.1} parent=0 // pred_check_branch
    %18 = sbr.rel (0) target = $region13
  $region12: #{tpu_custom_call.1} parent=0 // pred_region
    _
  $region13: #{tpu_custom_call.1} parent=0 // pred_fallthru
    _
  // Predicated region
  $region14: #{tpu_custom_call.1} parent=0 // pred_check
    _
  $region15: #{tpu_custom_call.1} parent=0 // pred_check_branch
    %20 = sbr.rel (0) target = $region17
  $region16: #{tpu_custom_call.1} parent=0 // pred_region
    _
  $region17: #{tpu_custom_call.1} parent=0 // pred_fallthru
    _
  // Predicated region
  $region18: #{tpu_custom_call.1} parent=0 // pred_check
    _
  $region19: #{tpu_custom_call.1} parent=0 // pred_check_branch
    %22 = sbr.rel (0) target = $region21
  $region20: #{tpu_custom_call.1} parent=0 // pred_region
    _
  $region21: #{tpu_custom_call.1} parent=0 // pred_fallthru
    _
  // Predicated region
  $region22: #{tpu_custom_call.1} parent=0 // pred_check
    _
  $region23: #{tpu_custom_call.1} parent=0 // pred_check_branch
    %24 = sbr.rel (0) target = $region25
  $region24: #{tpu_custom_call.1} parent=0 // pred_region
    _
  $region25: #{tpu_custom_call.1} parent=0 // pred_fallthru
    _
  %v26 = vlaneseq
  %v27 = vand.u32 %v26, 127
  %vm28 = vcmp.ge.s32.totalorder %v27, 64
  %vm29 = vcmp.lt.s32.totalorder %v27, 96
  %vm30 = vmand %vm28, %vm29
  %v31 = vsel %vm30, 1.0, 0.5
  %v32 = vld [vmem:[%s2] sm:$0xff]
  %v33 = vld [vmem:[%s2 + $0x8] sm:$0xff]
  %v34 = vld [vmem:[%s2 + $0x10] sm:$0xff]
  %v35 = vld [vmem:[%s2 + $0x18] sm:$0xff]
  %v36 = vmul.f32 %v32, %v31
  %v37 = vmul.f32 %v33, %v31
  %v38 = vmul.f32 %v34, %v31
  %v39 = vmul.f32 %v35, %v31
  %v40 = vpack.c.bf16 %v37, %v36
  %v41 = vpack.c.bf16 %v39, %v38
  %v42 = vld [vmem:[%s0] sm:$0xff]
  %v43 = vld [vmem:[%s0 + $0x8] sm:$0xff]
  %v44 = vld [vmem:[%s0 + $0x10] sm:$0xff]
  %v45 = vld [vmem:[%s0 + $0x18] sm:$0xff]
  %v46 = vld [vmem:[%s0 + $0x20] sm:$0xff]
  %v47 = vld [vmem:[%s0 + $0x28] sm:$0xff]
  %v48 = vld [vmem:[%s0 + $0x30] sm:$0xff]
  %v49 = vld [vmem:[%s0 + $0x38] sm:$0xff]
  %v50 = vpack.c.bf16 %v43, %v42
  %v51 = vpack.c.bf16 %v45, %v44
  %v52 = vpack.c.bf16 %v47, %v46
  %v53 = vpack.c.bf16 %v49, %v48
  %v54 = vld [vmem:[%s1] sm:$0xff]
  %v55 = vld [vmem:[%s1 + $0x8] sm:$0xff]
  %v56 = vpack.c.bf16 %v55, %v54
  %v57 = vld [vmem:[%s3] sm:$0x1]
  %v59 = vlaneseq
  %v60 = vshrl.u32 %v59, 7
  %v61 = vsub.s32 0, %v60
  %v62 = vrot.slane %v57, %v61
  %vm64 = vcmask 130048
  %v66 = vsel %vm64, %v50, 0
  %v69 = vsel %vm64, %v51, 0
  %v72 = vsel %vm64, %v52, 0
  %v75 = vsel %vm64, %v53, 0
  %77 = vmatprep.subr.bf16.mxu0 0
  %78 = vmatpush1.bf16.msra.mxu0 %v56
  %79 = vmatprep.subr.bf16.mxu0 0
  %80 = vmatpush1.bf16.msra.mxu0 0
  %81 = vmatprep.subr.bf16.mxu0 0
  %82 = vmatpush1.bf16.msra.mxu0 0
  %83 = vmatprep.subr.bf16.mxu0 0
  %84 = vmatpush1.bf16.msra.mxu0 0
  %85 = vmatprep.subr.bf16.mxu0 0
  %86 = vmatpush1.bf16.msra.mxu0 0
  %87 = vmatprep.subr.bf16.mxu0 0
  %88 = vmatpush1.bf16.msra.mxu0 0
  %89 = vmatprep.subr.bf16.mxu0 0
  %90 = vmatpush1.bf16.msra.mxu0 0
  %91 = vmatprep.subr.bf16.mxu0 0
  %92 = vmatpush1.bf16.msra.mxu0 0
  %93 = vmatprep.subr.bf16.mxu0 0
  %94 = vmatpush1.bf16.msra.mxu0 0
  %95 = vmatprep.subr.bf16.mxu0 0
  %96 = vmatpush1.bf16.msra.mxu0 0
  %97 = vmatprep.subr.bf16.mxu0 0
  %98 = vmatpush1.bf16.msra.mxu0 0
  %99 = vmatprep.subr.bf16.mxu0 0
  %100 = vmatpush1.bf16.msra.mxu0 0
  %101 = vmatprep.subr.bf16.mxu0 0
  %102 = vmatpush1.bf16.msra.mxu0 0
  %103 = vmatprep.subr.bf16.mxu0 0
  %104 = vmatpush1.bf16.msra.mxu0 0
  %105 = vmatprep.subr.bf16.mxu0 0
  %106 = vmatpush1.bf16.msra.mxu0 0
  %107 = vmatprep.subr.bf16.mxu0 0
  %108 = vmatpush1.bf16.msra.mxu0 0
  %109 = vmatprep.mubr.bf16.mxu0 0
  %110 = vmatmul.mubr.bf16.gmra.mrb[0].mxu0 %v66
  %v111 = vpop.f32.mrb[0].mxu0
  %v112 = vadd.f32 %v62, %v111
  %v113 = vpop.f32.mrb[0].mxu0
  %v114 = vpop.f32.mrb[0].mxu0
  %v115 = vadd.f32 %v62, %v114
  %v116 = vpop.f32.mrb[0].mxu0
  %117 = vmatprep.mubr.bf16.mxu0 0
  %118 = vmatmul.mubr.bf16.gmra.mrb[0].mxu0 %v69
  %v119 = vpop.f32.mrb[0].mxu0
  %v120 = vadd.f32 %v62, %v119
  %v121 = vpop.f32.mrb[0].mxu0
  %v122 = vpop.f32.mrb[0].mxu0
  %v123 = vadd.f32 %v62, %v122
  %v124 = vpop.f32.mrb[0].mxu0
  %125 = vmatprep.mubr.bf16.mxu0 0
  %126 = vmatmul.mubr.bf16.gmra.mrb[0].mxu0 %v72
  %v127 = vpop.f32.mrb[0].mxu0
  %v128 = vadd.f32 %v62, %v127
  %v129 = vpop.f32.mrb[0].mxu0
  %v130 = vpop.f32.mrb[0].mxu0
  %v131 = vadd.f32 %v62, %v130
  %v132 = vpop.f32.mrb[0].mxu0
  %133 = vmatprep.mubr.bf16.mxu0 0
  %134 = vmatmul.mubr.bf16.gmra.mrb[0].mxu0 %v75
  %v135 = vpop.f32.mrb[0].mxu0
  %v136 = vadd.f32 %v62, %v135
  %v137 = vpop.f32.mrb[0].mxu0
  %v138 = vpop.f32.mrb[0].mxu0
  %v139 = vadd.f32 %v62, %v138
  %v140 = vpop.f32.mrb[0].mxu0
  %141 = vdwg.mxu0
  %v142 = vmul.f32 %v112, %v31
  %v143 = vmul.f32 %v115, %v31
  %v144 = vmul.f32 %v120, %v31
  %v145 = vmul.f32 %v123, %v31
  %v146 = vmul.f32 %v128, %v31
  %v147 = vmul.f32 %v131, %v31
  %v148 = vmul.f32 %v136, %v31
  %v149 = vmul.f32 %v139, %v31
  %v150 = vtanh.pop %v142
  %v151 = vmul.f32 %v150, 0.5
  %v152 = vadd.f32 %v151, 0.5
  %154 = vrot.lane.b32.xlu0 %v150, 64
  %v155 = vpop.permute.xlu0 %154
  %v157 = vmul.f32 %v152, %v155
  %v158 = vtanh.pop %v157
  %160 = vrot.lane.b32.xlu0 %v158, 96
  %v161 = vpop.permute.xlu0 %160
  %v163 = vmul.f32 %v152, %v161
  %v164 = vpack.c.bf16 %v163, %v163
  %166 = vrot.lane.b32.xlu0 %v164, 32
  %v167 = vpop.permute.xlu0 %166
  %vm168 = vcmask 261120
  %v170 = vsel %vm168, %v167, 0
  %172 = vmatprep.subr.bf16.mxu0 0
  %173 = vmatpush1.bf16.msra.mxu0 %v40
  %174 = vmatprep.subr.bf16.mxu0 0
  %175 = vmatpush1.bf16.msra.mxu0 %v41
  %176 = vmatprep.subr.bf16.mxu0 0
  %177 = vmatpush1.bf16.msra.mxu0 0
  %178 = vmatprep.subr.bf16.mxu0 0
  %179 = vmatpush1.bf16.msra.mxu0 0
  %180 = vmatprep.subr.bf16.mxu0 0
  %181 = vmatpush1.bf16.msra.mxu0 0
  %182 = vmatprep.subr.bf16.mxu0 0
  %183 = vmatpush1.bf16.msra.mxu0 0
  %184 = vmatprep.subr.bf16.mxu0 0
  %185 = vmatpush1.bf16.msra.mxu0 0
  %186 = vmatprep.subr.bf16.mxu0 0
  %187 = vmatpush1.bf16.msra.mxu0 0
  %188 = vmatprep.subr.bf16.mxu0 0
  %189 = vmatpush1.bf16.msra.mxu0 0
  %190 = vmatprep.subr.bf16.mxu0 0
  %191 = vmatpush1.bf16.msra.mxu0 0
  %192 = vmatprep.subr.bf16.mxu0 0
  %193 = vmatpush1.bf16.msra.mxu0 0
  %194 = vmatprep.subr.bf16.mxu0 0
  %195 = vmatpush1.bf16.msra.mxu0 0
  %196 = vmatprep.subr.bf16.mxu0 0
  %197 = vmatpush1.bf16.msra.mxu0 0
  %198 = vmatprep.subr.bf16.mxu0 0
  %199 = vmatpush1.bf16.msra.mxu0 0
  %200 = vmatprep.subr.bf16.mxu0 0
  %201 = vmatpush1.bf16.msra.mxu0 0
  %202 = vmatprep.subr.bf16.mxu0 0
  %203 = vmatpush1.bf16.msra.mxu0 0
  %204 = vmatprep.mubr.bf16.mxu0 0
  %205 = vmatmul.mubr.bf16.gmra.mrb[0].mxu0 %v170
  %v206 = vpop.f32.mrb[0].mxu0
  %v207 = vadd.f32 %v143, %v206
  %v208 = vpop.f32.mrb[0].mxu0
  %v209 = vpop.f32.mrb[0].mxu0
  %v210 = vpop.f32.mrb[0].mxu0
  %211 = vdwg.mxu0
  %v212 = vtanh.pop %v207
  %v213 = vmul.f32 %v212, 0.5
  %v214 = vadd.f32 %v213, 0.5
  %216 = vrot.lane.b32.xlu0 %v157, 32
  %v217 = vpop.permute.xlu0 %216
  %v219 = vmul.f32 %v214, %v217
  %221 = vrot.lane.b32.xlu0 %v212, 64
  %v222 = vpop.permute.xlu0 %221
  %v224 = vmul.f32 %v214, %v222
  %226 = vrot.lane.b32.xlu0 %v224, 32
  %v227 = vpop.permute.xlu0 %226
  %v229 = vadd.f32 %v219, %v227
  %v230 = vtanh.pop %v229
  %232 = vrot.lane.b32.xlu0 %v230, 64
  %v233 = vpop.permute.xlu0 %232
  %v235 = vmul.f32 %v214, %v233
  %v236 = vpack.c.bf16 %v235, %v235
  %238 = vrot.lane.b32.xlu0 %v236, 32
  %v239 = vpop.permute.xlu0 %238
  %v241 = vsel %vm168, %v239, 0
  %243 = vmatprep.subr.bf16.mxu0 0
  %244 = vmatpush1.bf16.msra.mxu0 %v40
  %245 = vmatprep.subr.bf16.mxu0 0
  %246 = vmatpush1.bf16.msra.mxu0 %v41
  %247 = vmatprep.subr.bf16.mxu0 0
  %248 = vmatpush1.bf16.msra.mxu0 0
  %249 = vmatprep.subr.bf16.mxu0 0
  %250 = vmatpush1.bf16.msra.mxu0 0
  %251 = vmatprep.subr.bf16.mxu0 0
  %252 = vmatpush1.bf16.msra.mxu0 0
  %253 = vmatprep.subr.bf16.mxu0 0
  %254 = vmatpush1.bf16.msra.mxu0 0
  %255 = vmatprep.subr.bf16.mxu0 0
  %256 = vmatpush1.bf16.msra.mxu0 0
  %257 = vmatprep.subr.bf16.mxu0 0
  %258 = vmatpush1.bf16.msra.mxu0 0
  %259 = vmatprep.subr.bf16.mxu0 0
  %260 = vmatpush1.bf16.msra.mxu0 0
  %261 = vmatprep.subr.bf16.mxu0 0
  %262 = vmatpush1.bf16.msra.mxu0 0
  %263 = vmatprep.subr.bf16.mxu0 0
  %264 = vmatpush1.bf16.msra.mxu0 0
  %265 = vmatprep.subr.bf16.mxu0 0
  %266 = vmatpush1.bf16.msra.mxu0 0
  %267 = vmatprep.subr.bf16.mxu0 0
  %268 = vmatpush1.bf16.msra.mxu0 0
  %269 = vmatprep.subr.bf16.mxu0 0
  %270 = vmatpush1.bf16.msra.mxu0 0
  %271 = vmatprep.subr.bf16.mxu0 0
  %272 = vmatpush1.bf16.msra.mxu0 0
  %273 = vmatprep.subr.bf16.mxu0 0
  %274 = vmatpush1.bf16.msra.mxu0 0
  %275 = vmatprep.mubr.bf16.mxu0 0
  %276 = vmatmul.mubr.bf16.gmra.mrb[0].mxu0 %v241
  %v277 = vpop.f32.mrb[0].mxu0
  %v278 = vadd.f32 %v144, %v277
  %v279 = vpop.f32.mrb[0].mxu0
  %v280 = vpop.f32.mrb[0].mxu0
  %v281 = vpop.f32.mrb[0].mxu0
  %282 = vdwg.mxu0
  %v283 = vtanh.pop %v278
  %v284 = vmul.f32 %v283, 0.5
  %v285 = vadd.f32 %v284, 0.5
  %v286 = vmul.f32 %v285, %v229
  %288 = vrot.lane.b32.xlu0 %v283, 64
  %v289 = vpop.permute.xlu0 %288
  %v291 = vmul.f32 %v285, %v289
  %293 = vrot.lane.b32.xlu0 %v291, 32
  %v294 = vpop.permute.xlu0 %293
  %v296 = vadd.f32 %v286, %v294
  %v297 = vtanh.pop %v296
  %299 = vrot.lane.b32.xlu0 %v297, 64
  %v300 = vpop.permute.xlu0 %299
  %v302 = vmul.f32 %v285, %v300
  %v303 = vpack.c.bf16 %v302, %v302
  %305 = vrot.lane.b32.xlu0 %v303, 32
  %v306 = vpop.permute.xlu0 %305
  %v308 = vsel %vm168, %v306, 0
  %310 = vmatprep.subr.bf16.mxu0 0
  %311 = vmatpush1.bf16.msra.mxu0 %v40
  %312 = vmatprep.subr.bf16.mxu0 0
  %313 = vmatpush1.bf16.msra.mxu0 %v41
  %314 = vmatprep.subr.bf16.mxu0 0
  %315 = vmatpush1.bf16.msra.mxu0 0
  %316 = vmatprep.subr.bf16.mxu0 0
  %317 = vmatpush1.bf16.msra.mxu0 0
  %318 = vmatprep.subr.bf16.mxu0 0
  %319 = vmatpush1.bf16.msra.mxu0 0
  %320 = vmatprep.subr.bf16.mxu0 0
  %321 = vmatpush1.bf16.msra.mxu0 0
  %322 = vmatprep.subr.bf16.mxu0 0
  %323 = vmatpush1.bf16.msra.mxu0 0
  %324 = vmatprep.subr.bf16.mxu0 0
  %325 = vmatpush1.bf16.msra.mxu0 0
  %326 = vmatprep.subr.bf16.mxu0 0
  %327 = vmatpush1.bf16.msra.mxu0 0
  %328 = vmatprep.subr.bf16.mxu0 0
  %329 = vmatpush1.bf16.msra.mxu0 0
  %330 = vmatprep.subr.bf16.mxu0 0
  %331 = vmatpush1.bf16.msra.mxu0 0
  %332 = vmatprep.subr.bf16.mxu0 0
  %333 = vmatpush1.bf16.msra.mxu0 0
  %334 = vmatprep.subr.bf16.mxu0 0
  %335 = vmatpush1.bf16.msra.mxu0 0
  %336 = vmatprep.subr.bf16.mxu0 0
  %337 = vmatpush1.bf16.msra.mxu0 0
  %338 = vmatprep.subr.bf16.mxu0 0
  %339 = vmatpush1.bf16.msra.mxu0 0
  %340 = vmatprep.subr.bf16.mxu0 0
  %341 = vmatpush1.bf16.msra.mxu0 0
  %342 = vmatprep.mubr.bf16.mxu0 0
  %343 = vmatmul.mubr.bf16.gmra.mrb[0].mxu0 %v308
  %v344 = vpop.f32.mrb[0].mxu0
  %v345 = vadd.f32 %v145, %v344
  %v346 = vpop.f32.mrb[0].mxu0
  %v347 = vpop.f32.mrb[0].mxu0
  %v348 = vpop.f32.mrb[0].mxu0
  %349 = vdwg.mxu0
  %v350 = vtanh.pop %v345
  %v351 = vmul.f32 %v350, 0.5
  %v352 = vadd.f32 %v351, 0.5
  %v353 = vmul.f32 %v352, %v296
  %355 = vrot.lane.b32.xlu0 %v350, 64
  %v356 = vpop.permute.xlu0 %355
  %v358 = vmul.f32 %v352, %v356
  %360 = vrot.lane.b32.xlu0 %v358, 32
  %v361 = vpop.permute.xlu0 %360
  %v363 = vadd.f32 %v353, %v361
  %v364 = vtanh.pop %v363
  %366 = vrot.lane.b32.xlu0 %v364, 64
  %v367 = vpop.permute.xlu0 %366
  %v369 = vmul.f32 %v352, %v367
  %v370 = vpack.c.bf16 %v369, %v369
  %372 = vrot.lane.b32.xlu0 %v370, 32
  %v373 = vpop.permute.xlu0 %372
  %v375 = vsel %vm168, %v373, 0
  %377 = vmatprep.subr.bf16.mxu0 0
  %378 = vmatpush1.bf16.msra.mxu0 %v40
  %379 = vmatprep.subr.bf16.mxu0 0
  %380 = vmatpush1.bf16.msra.mxu0 %v41
  %381 = vmatprep.subr.bf16.mxu0 0
  %382 = vmatpush1.bf16.msra.mxu0 0
  %383 = vmatprep.subr.bf16.mxu0 0
  %384 = vmatpush1.bf16.msra.mxu0 0
  %385 = vmatprep.subr.bf16.mxu0 0
  %386 = vmatpush1.bf16.msra.mxu0 0
  %387 = vmatprep.subr.bf16.mxu0 0
  %388 = vmatpush1.bf16.msra.mxu0 0
  %389 = vmatprep.subr.bf16.mxu0 0
  %390 = vmatpush1.bf16.msra.mxu0 0
  %391 = vmatprep.subr.bf16.mxu0 0
  %392 = vmatpush1.bf16.msra.mxu0 0
  %393 = vmatprep.subr.bf16.mxu0 0
  %394 = vmatpush1.bf16.msra.mxu0 0
  %395 = vmatprep.subr.bf16.mxu0 0
  %396 = vmatpush1.bf16.msra.mxu0 0
  %397 = vmatprep.subr.bf16.mxu0 0
  %398 = vmatpush1.bf16.msra.mxu0 0
  %399 = vmatprep.subr.bf16.mxu0 0
  %400 = vmatpush1.bf16.msra.mxu0 0
  %401 = vmatprep.subr.bf16.mxu0 0
  %402 = vmatpush1.bf16.msra.mxu0 0
  %403 = vmatprep.subr.bf16.mxu0 0
  %404 = vmatpush1.bf16.msra.mxu0 0
  %405 = vmatprep.subr.bf16.mxu0 0
  %406 = vmatpush1.bf16.msra.mxu0 0
  %407 = vmatprep.subr.bf16.mxu0 0
  %408 = vmatpush1.bf16.msra.mxu0 0
  %409 = vmatprep.mubr.bf16.mxu0 0
  %410 = vmatmul.mubr.bf16.gmra.mrb[0].mxu0 %v375
  %v411 = vpop.f32.mrb[0].mxu0
  %v412 = vadd.f32 %v146, %v411
  %v413 = vpop.f32.mrb[0].mxu0
  %v414 = vpop.f32.mrb[0].mxu0
  %v415 = vpop.f32.mrb[0].mxu0
  %416 = vdwg.mxu0
  %v417 = vtanh.pop %v412
  %v418 = vmul.f32 %v417, 0.5
  %v419 = vadd.f32 %v418, 0.5
  %v420 = vmul.f32 %v419, %v363
  %422 = vrot.lane.b32.xlu0 %v417, 64
  %v423 = vpop.permute.xlu0 %422
  %v425 = vmul.f32 %v419, %v423
  %427 = vrot.lane.b32.xlu0 %v425, 32
  %v428 = vpop.permute.xlu0 %427
  %v430 = vadd.f32 %v420, %v428
  %v431 = vtanh.pop %v430
  %433 = vrot.lane.b32.xlu0 %v431, 64
  %v434 = vpop.permute.xlu0 %433
  %v436 = vmul.f32 %v419, %v434
  %v437 = vpack.c.bf16 %v436, %v436
  %439 = vrot.lane.b32.xlu0 %v437, 32
  %v440 = vpop.permute.xlu0 %439
  %v442 = vsel %vm168, %v440, 0
  %444 = vmatprep.subr.bf16.mxu0 0
  %445 = vmatpush1.bf16.msra.mxu0 %v40
  %446 = vmatprep.subr.bf16.mxu0 0
  %447 = vmatpush1.bf16.msra.mxu0 %v41
  %448 = vmatprep.subr.bf16.mxu0 0
  %449 = vmatpush1.bf16.msra.mxu0 0
  %450 = vmatprep.subr.bf16.mxu0 0
  %451 = vmatpush1.bf16.msra.mxu0 0
  %452 = vmatprep.subr.bf16.mxu0 0
  %453 = vmatpush1.bf16.msra.mxu0 0
  %454 = vmatprep.subr.bf16.mxu0 0
  %455 = vmatpush1.bf16.msra.mxu0 0
  %456 = vmatprep.subr.bf16.mxu0 0
  %457 = vmatpush1.bf16.msra.mxu0 0
  %458 = vmatprep.subr.bf16.mxu0 0
  %459 = vmatpush1.bf16.msra.mxu0 0
  %460 = vmatprep.subr.bf16.mxu0 0
  %461 = vmatpush1.bf16.msra.mxu0 0
  %462 = vmatprep.subr.bf16.mxu0 0
  %463 = vmatpush1.bf16.msra.mxu0 0
  %464 = vmatprep.subr.bf16.mxu0 0
  %465 = vmatpush1.bf16.msra.mxu0 0
  %466 = vmatprep.subr.bf16.mxu0 0
  %467 = vmatpush1.bf16.msra.mxu0 0
  %468 = vmatprep.subr.bf16.mxu0 0
  %469 = vmatpush1.bf16.msra.mxu0 0
  %470 = vmatprep.subr.bf16.mxu0 0
  %471 = vmatpush1.bf16.msra.mxu0 0
  %472 = vmatprep.subr.bf16.mxu0 0
  %473 = vmatpush1.bf16.msra.mxu0 0
  %474 = vmatprep.subr.bf16.mxu0 0
  %475 = vmatpush1.bf16.msra.mxu0 0
  %476 = vmatprep.mubr.bf16.mxu0 0
  %477 = vmatmul.mubr.bf16.gmra.mrb[0].mxu0 %v442
  %v478 = vpop.f32.mrb[0].mxu0
  %v479 = vadd.f32 %v147, %v478
  %v480 = vpop.f32.mrb[0].mxu0
  %v481 = vpop.f32.mrb[0].mxu0
  %v482 = vpop.f32.mrb[0].mxu0
  %483 = vdwg.mxu0
  %v484 = vtanh.pop %v479
  %v485 = vmul.f32 %v484, 0.5
  %v486 = vadd.f32 %v485, 0.5
  %v487 = vmul.f32 %v486, %v430
  %489 = vrot.lane.b32.xlu0 %v484, 64
  %v490 = vpop.permute.xlu0 %489
  %v492 = vmul.f32 %v486, %v490
  %494 = vrot.lane.b32.xlu0 %v492, 32
  %v495 = vpop.permute.xlu0 %494
  %v497 = vadd.f32 %v487, %v495
  %v498 = vtanh.pop %v497
  %500 = vrot.lane.b32.xlu0 %v498, 64
  %v501 = vpop.permute.xlu0 %500
  %v503 = vmul.f32 %v486, %v501
  %v504 = vpack.c.bf16 %v503, %v503
  %506 = vrot.lane.b32.xlu0 %v504, 32
  %v507 = vpop.permute.xlu0 %506
  %v509 = vsel %vm168, %v507, 0
  %511 = vmatprep.subr.bf16.mxu0 0
  %512 = vmatpush1.bf16.msra.mxu0 %v40
  %513 = vmatprep.subr.bf16.mxu0 0
  %514 = vmatpush1.bf16.msra.mxu0 %v41
  %515 = vmatprep.subr.bf16.mxu0 0
  %516 = vmatpush1.bf16.msra.mxu0 0
  %517 = vmatprep.subr.bf16.mxu0 0
  %518 = vmatpush1.bf16.msra.mxu0 0
  %519 = vmatprep.subr.bf16.mxu0 0
  %520 = vmatpush1.bf16.msra.mxu0 0
  %521 = vmatprep.subr.bf16.mxu0 0
  %522 = vmatpush1.bf16.msra.mxu0 0
  %523 = vmatprep.subr.bf16.mxu0 0
  %524 = vmatpush1.bf16.msra.mxu0 0
  %525 = vmatprep.subr.bf16.mxu0 0
  %526 = vmatpush1.bf16.msra.mxu0 0
  %527 = vmatprep.subr.bf16.mxu0 0
  %528 = vmatpush1.bf16.msra.mxu0 0
  %529 = vmatprep.subr.bf16.mxu0 0
  %530 = vmatpush1.bf16.msra.mxu0 0
  %531 = vmatprep.subr.bf16.mxu0 0
  %532 = vmatpush1.bf16.msra.mxu0 0
  %533 = vmatprep.subr.bf16.mxu0 0
  %534 = vmatpush1.bf16.msra.mxu0 0
  %535 = vmatprep.subr.bf16.mxu0 0
  %536 = vmatpush1.bf16.msra.mxu0 0
  %537 = vmatprep.subr.bf16.mxu0 0
  %538 = vmatpush1.bf16.msra.mxu0 0
  %539 = vmatprep.subr.bf16.mxu0 0
  %540 = vmatpush1.bf16.msra.mxu0 0
  %541 = vmatprep.subr.bf16.mxu0 0
  %542 = vmatpush1.bf16.msra.mxu0 0
  %543 = vmatprep.mubr.bf16.mxu0 0
  %544 = vmatmul.mubr.bf16.gmra.mrb[0].mxu0 %v509
  %v545 = vpop.f32.mrb[0].mxu0
  %v546 = vadd.f32 %v148, %v545
  %v547 = vpop.f32.mrb[0].mxu0
  %v548 = vpop.f32.mrb[0].mxu0
  %v549 = vpop.f32.mrb[0].mxu0
  %550 = vdwg.mxu0
  %v551 = vtanh.pop %v546
  %v552 = vmul.f32 %v551, 0.5
  %v553 = vadd.f32 %v552, 0.5
  %v554 = vmul.f32 %v553, %v497
  %556 = vrot.lane.b32.xlu0 %v551, 64
  %v557 = vpop.permute.xlu0 %556
  %v559 = vmul.f32 %v553, %v557
  %561 = vrot.lane.b32.xlu0 %v559, 32
  %v562 = vpop.permute.xlu0 %561
  %v564 = vadd.f32 %v554, %v562
  %v565 = vtanh.pop %v564
  %567 = vrot.lane.b32.xlu0 %v565, 64
  %v568 = vpop.permute.xlu0 %567
  %v570 = vmul.f32 %v553, %v568
  %v571 = vpack.c.bf16 %v570, %v570
  %573 = vrot.lane.b32.xlu0 %v571, 32
  %v574 = vpop.permute.xlu0 %573
  %v576 = vsel %vm168, %v574, 0
  %578 = vmatprep.subr.bf16.mxu0 0
  %579 = vmatpush1.bf16.msra.mxu0 %v40
  %580 = vmatprep.subr.bf16.mxu0 0
  %581 = vmatpush1.bf16.msra.mxu0 %v41
  %582 = vmatprep.subr.bf16.mxu0 0
  %583 = vmatpush1.bf16.msra.mxu0 0
  %584 = vmatprep.subr.bf16.mxu0 0
  %585 = vmatpush1.bf16.msra.mxu0 0
  %586 = vmatprep.subr.bf16.mxu0 0
  %587 = vmatpush1.bf16.msra.mxu0 0
  %588 = vmatprep.subr.bf16.mxu0 0
  %589 = vmatpush1.bf16.msra.mxu0 0
  %590 = vmatprep.subr.bf16.mxu0 0
  %591 = vmatpush1.bf16.msra.mxu0 0
  %592 = vmatprep.subr.bf16.mxu0 0
  %593 = vmatpush1.bf16.msra.mxu0 0
  %594 = vmatprep.subr.bf16.mxu0 0
  %595 = vmatpush1.bf16.msra.mxu0 0
  %596 = vmatprep.subr.bf16.mxu0 0
  %597 = vmatpush1.bf16.msra.mxu0 0
  %598 = vmatprep.subr.bf16.mxu0 0
  %599 = vmatpush1.bf16.msra.mxu0 0
  %600 = vmatprep.subr.bf16.mxu0 0
  %601 = vmatpush1.bf16.msra.mxu0 0
  %602 = vmatprep.subr.bf16.mxu0 0
  %603 = vmatpush1.bf16.msra.mxu0 0
  %604 = vmatprep.subr.bf16.mxu0 0
  %605 = vmatpush1.bf16.msra.mxu0 0
  %606 = vmatprep.subr.bf16.mxu0 0
  %607 = vmatpush1.bf16.msra.mxu0 0
  %608 = vmatprep.subr.bf16.mxu0 0
  %609 = vmatpush1.bf16.msra.mxu0 0
  %610 = vmatprep.mubr.bf16.mxu0 0
  %611 = vmatmul.mubr.bf16.gmra.mrb[0].mxu0 %v576
  %v612 = vpop.f32.mrb[0].mxu0
  %v613 = vadd.f32 %v149, %v612
  %v614 = vpop.f32.mrb[0].mxu0
  %v615 = vpop.f32.mrb[0].mxu0
  %v616 = vpop.f32.mrb[0].mxu0
  %617 = vdwg.mxu0
  %v618 = vtanh.pop %v613
  %v619 = vmul.f32 %v618, 0.5
  %v620 = vadd.f32 %v619, 0.5
  %v621 = vmul.f32 %v620, %v564
  %623 = vrot.lane.b32.xlu0 %v618, 64
  %v624 = vpop.permute.xlu0 %623
  %v626 = vmul.f32 %v620, %v624
  %628 = vrot.lane.b32.xlu0 %v626, 32
  %v629 = vpop.permute.xlu0 %628
  %v631 = vadd.f32 %v621, %v629
  %v632 = vtanh.pop %v631
  %634 = vrot.lane.b32.xlu0 %v632, 64
  %v635 = vpop.permute.xlu0 %634
  %v637 = vmul.f32 %v620, %v635
  %v638 = vld [vmem:[%s4] sm:$0x1]
  %v640 = vlaneseq
  %v641 = vshrl.u32 %v640, 7
  %v642 = vsub.s32 0, %v641
  %v643 = vrot.slane %v638, %v642
  %644 = vrot.lane.b32.xlu0 %v643, 96
  %v645 = vpop.permute.xlu0 %644
  %v647 = vmul.f32 %v637, %v645
  %649 = vrot.lane.b32.xlu0 %v647, 32
  %v650 = vpop.permute.xlu0 %649
  %v652 = vsel %vm168, %v650, 0.0
  %653 = vadd.xlane.f32.xlu0 %v652
  %v654 = vpop.xlane.xlu0 %653
  %v655 = vld [vmem:[#allocation2] sm:$0x1]
  %v657 = vlaneseq
  %v658 = vshrl.u32 %v657, 7
  %v659 = vsub.s32 0, %v658
  %v660 = vrot.slane %v655, %v659
  %v662 = vadd.f32 %v654, %v660
  %vm663 = vcmask 7168
  %664 = vst.msk [vmem:[%s6] sm:$0xff] %vm663, %v662
  // Predicated region
  $region26: #{tpu_custom_call.1} parent=0 // pred_check
    _
  $region27: #{tpu_custom_call.1} parent=0 // pred_check_branch
    %666 = sbr.rel (0) target = $region29
  $region28: #{tpu_custom_call.1} parent=0 // pred_region
    _
  $region29: #{tpu_custom_call.1} parent=0 // pred_fallthru
    _
  // Predicated region
  $region30: #{tpu_custom_call.1} parent=0 // pred_check
    _
  $region31: #{tpu_custom_call.1} parent=0 // pred_check_branch
    %668 = sbr.rel (0) target = $region33
  $region32: #{tpu_custom_call.1} parent=0 // pred_region
    _
  $region33: #{tpu_custom_call.1} parent=0 // pred_fallthru
    _

</llo_original>
